<compile_context>
chip_gen: v5e
topology: v5e:2x2
jax: 0.10.0
libtpu: 0.0.40
codegen_flags: <defaults>
</compile_context>

<pallas_src>
import jax
import jax.numpy as jnp
from jax.experimental import pallas as pl
from jax.experimental.pallas import tpu as pltpu


def _round_up(v, m):
    return -(-v // m) * m


def _make_kernel(chunk, n_chunks):
    """Kernel specialized on static (chunk, n_chunks)."""

    def kernel(x_ref, w1_ref, b1_ref, w2_ref, b2_ref, w3_ref, b3_ref, o_ref):
        def chunk_row(r):
            # fc1 (+ dropout=identity) + relu : bf16 MXU matmul, f32 accumulate.
            x = x_ref[pl.ds(r, chunk), :].astype(jnp.bfloat16)
            h1 = jnp.dot(x, w1_ref[...], preferred_element_type=jnp.float32)
            h1 = jnp.maximum(h1 + b1_ref[...], 0.0)
            # fc2 (+ dropout=identity) + relu : output lane-padded 64 -> 128.
            h2 = jnp.dot(h1.astype(jnp.bfloat16), w2_ref[...],
                         preferred_element_type=jnp.float32)
            h2 = jnp.maximum(h2 + b2_ref[...], 0.0)
            # fc3 (N=1): transpose (XLU) + VPU multiply + sublane reduction
            # -> (1, chunk) row, lane-dense (no degenerate MXU pass, no masked
            # column store).
            o = jnp.sum(h2.T * w3_ref[...], axis=0, keepdims=True) + b3_ref[0]
            return o.astype(o_ref.dtype)

        if n_chunks == 1:
            o_ref[...] = chunk_row(0)
        else:
            def body(c, carry):
                r = pl.multiple_of(c * chunk, chunk)
                o_ref[:, pl.ds(r, chunk)] = chunk_row(r)
                return carry

            jax.lax.fori_loop(0, n_chunks, body, 0, unroll=True)

    return kernel


def meta_decoder_forward(x, params):
    """x: (B, 1, combined_dim) float -> (B,) float32."""
    w1, b1, w2, b2, w3, b3 = params
    x2d = x.reshape(x.shape[0], x.shape[-1])          # squeeze(1)
    B, D = x2d.shape
    itemsize = x2d.dtype.itemsize

    # ---- one-time weight preprocessing --------------------------------------
    # Pad fc2/fc3 dims 64 -> 128 (zero cols stay zero through bias+ReLU and get
    # zero weight in the fc3 reduction).  MXU operands in bf16.
    w1_bf = w1.astype(jnp.bfloat16)                                      # (D,128)
    b1r = b1.reshape(1, 128).astype(jnp.float32)
    w2p = (jnp.zeros((128, 128), jnp.float32).at[:, :64].set(w2)
           .astype(jnp.bfloat16))                                        # (128,128)
    b2p = jnp.zeros((1, 128), jnp.float32).at[:, :64].set(b2.reshape(1, 64))
    w3c = jnp.zeros((128, 1), jnp.float32).at[:64, :].set(w3.reshape(64, 1))
    b3s = b3.reshape((1,)).astype(jnp.float32)

    # ---- batch tiling: ~2 MiB of x per pipeline buffer, 256-row sub-chunks ---
    chunk = 256
    tb = (2 << 20) // max(1, itemsize * D)
    tb = max(chunk, min(2048, _round_up(max(tb, 1), chunk)))
    b8 = _round_up(B, 8)
    if b8 <= tb:                           # whole batch fits one tile
        chunk = min(chunk, b8)
        tb = _round_up(b8, chunk)
        n_tiles = 1
    else:                                  # balance tiles to minimize padding
        n_tiles = -(-B // tb)
        tb = _round_up(-(-b8 // n_tiles), chunk)
    b_pad = n_tiles * tb
    if b_pad != B:
        x2d = jnp.pad(x2d, ((0, b_pad - B), (0, 0)))

    # ---- explicit VMEM budget (v5e default scoped = 16 MiB; v7x phys = 64) ---
    vmem_need = (2 * tb * D * itemsize                 # x double buffer
                 + 2 * 8 * tb * 4                      # (1, tb) out (padded), x2
                 + 2 * (w1_bf.size + w2p.size) * 2     # bf16 weights (2 bufs)
                 + 2 * (b1r.size + b2p.size + w3c.size) * 4)
    vmem_limit = int(min(56 << 20, max(16 << 20, vmem_need + (4 << 20))))

    def const(shape):
        zero = (0,) * len(shape)
        return pl.BlockSpec(shape, lambda i: zero)

    out = pl.pallas_call(
        _make_kernel(chunk, tb // chunk),
        out_shape=jax.ShapeDtypeStruct((1, b_pad), jnp.float32),
        grid=(n_tiles,),
        in_specs=[
            pl.BlockSpec((tb, D), lambda i: (i, 0)),   # x: streamed per tile
            const(w1_bf.shape), const(b1r.shape),      # weights: VMEM-resident
            const(w2p.shape), const(b2p.shape),
            const(w3c.shape),
            pl.BlockSpec((1,), lambda i: (0,),         # b3 scalar in SMEM
                         memory_space=pltpu.MemorySpace.SMEM),
        ],
        out_specs=pl.BlockSpec((1, tb), lambda i: (0, i)),   # lane-dense row
        compiler_params=pltpu.CompilerParams(
            dimension_semantics=("parallel",),
            vmem_limit_bytes=vmem_limit),
    )(x2d, w1_bf, b1r, w2p, b2p, w3c, b3s)

    return out[0, :B]


def init_params(key, combined_dim):
    """Deterministic synthetic params.  Weights stored as (in, out)."""
    ks = jax.random.split(key, 6)

    def lin(kw, kb, fan_in, fan_out):
        bound = 1.0 / jnp.sqrt(fan_in)
        w = jax.random.uniform(kw, (fan_in, fan_out), jnp.float32, -bound, bound)
        b = jax.random.uniform(kb, (1, fan_out), jnp.float32, -bound, bound)
        return w, b

    w1, b1 = lin(ks[0], ks[1], combined_dim, 128)
    w2, b2 = lin(ks[2], ks[3], 128, 64)
    w3, b3 = lin(ks[4], ks[5], 64, 1)
    return (w1, b1, w2, b2, w3, b3)


def reference_forward(x, params):
    """Pure-JAX f32 reference of the PyTorch forward (eval mode)."""
    w1, b1, w2, b2, w3, b3 = params
    h = x.reshape(x.shape[0], x.shape[-1])
    h = jnp.maximum(h @ w1 + b1, 0.0)
    h = jnp.maximum(h @ w2 + b2, 0.0)
    h = h @ w3 + b3
    return h[:, 0]


if __name__ == "__main__":
    key = jax.random.PRNGKey(0)
    k_x, k_p = jax.random.split(key)

    B, combined_dim = 8, 32
    x = jax.random.normal(k_x, (B, 1, combined_dim), jnp.float32)
    params = init_params(k_p, combined_dim)

    out = meta_decoder_forward(x, params)
    out = jax.block_until_ready(out)

    ref = reference_forward(x, params)
    assert out.shape == (B,), out.shape
    # bf16 MXU operands -> relaxed tolerance vs the f32 reference.
    assert jnp.allclose(out, ref, atol=5e-2, rtol=5e-2), "mismatch vs reference"

    print("KERNEL_OK")
</pallas_src>

<mosaic_0001>
module attributes {stable_mosaic.version = 11 : i64} {
  func.func @kernel(%arg0: i32, %arg1: memref<8x32xf32, #tpu.memory_space<vmem>>, %arg2: memref<32x128xbf16, #tpu.memory_space<vmem>>, %arg3: memref<1x128xf32, #tpu.memory_space<vmem>>, %arg4: memref<128x128xbf16, #tpu.memory_space<vmem>>, %arg5: memref<1x128xf32, #tpu.memory_space<vmem>>, %arg6: memref<128x1xf32, #tpu.memory_space<vmem>>, %arg7: memref<1xf32, #tpu.memory_space<smem>>, %arg8: memref<1x8xf32, #tpu.memory_space<vmem>>) attributes {dimension_semantics = [#tpu.dimension_semantics<parallel>], iteration_bounds = array<i64: 1>, scalar_prefetch = 0 : i64, scratch_operands = 0 : i64, tpu.core_type = #tpu.core_type<tc>, window_params = [{transform_indices = @transform_0, window_bounds = array<i64: 8, 32>}, {pipeline_mode = #tpu.pipeline_mode<synchronous>, transform_indices = @transform_1, window_bounds = array<i64: 32, 128>}, {pipeline_mode = #tpu.pipeline_mode<synchronous>, transform_indices = @transform_2, window_bounds = array<i64: 1, 128>}, {pipeline_mode = #tpu.pipeline_mode<synchronous>, transform_indices = @transform_3, window_bounds = array<i64: 128, 128>}, {pipeline_mode = #tpu.pipeline_mode<synchronous>, transform_indices = @transform_4, window_bounds = array<i64: 1, 128>}, {pipeline_mode = #tpu.pipeline_mode<synchronous>, transform_indices = @transform_5, window_bounds = array<i64: 128, 1>}, {transform_indices = @transform_6, window_bounds = array<i64: 1>}, {transform_indices = @transform_7, window_bounds = array<i64: 1, 8>}]} {
    %c0 = arith.constant 0 : index
    %c0_0 = arith.constant 0 : index
    %0 = vector.load %arg1[%c0, %c0_0] : memref<8x32xf32, #tpu.memory_space<vmem>>, vector<8x32xf32>
    %1 = arith.truncf %0 : vector<8x32xf32> to vector<8x32xbf16>
    %c0_1 = arith.constant 0 : index
    %c0_2 = arith.constant 0 : index
    %2 = vector.load %arg2[%c0_1, %c0_2] : memref<32x128xbf16, #tpu.memory_space<vmem>>, vector<32x128xbf16>
    %cst = arith.constant dense<0.000000e+00> : vector<8x128xf32>
    %3 = tpu.matmul %1, %2, %cst {dimension_numbers = #tpu.dot_dimension_numbers<[1], [0], [0], [1], [0, 0, 1, 1], [], []>} : vector<8x32xbf16>, vector<32x128xbf16>, vector<8x128xf32> -> vector<8x128xf32>
    %c0_3 = arith.constant 0 : index
    %c0_4 = arith.constant 0 : index
    %4 = vector.load %arg3[%c0_3, %c0_4] : memref<1x128xf32, #tpu.memory_space<vmem>>, vector<1x128xf32>
    %5 = vector.broadcast %4 : vector<1x128xf32> to vector<8x128xf32>
    %6 = arith.addf %3, %5 : vector<8x128xf32>
    %cst_5 = arith.constant 0.000000e+00 : f32
    %7 = vector.broadcast %cst_5 : f32 to vector<8x128xf32>
    %8 = arith.maximumf %6, %7 : vector<8x128xf32>
    %9 = arith.truncf %8 : vector<8x128xf32> to vector<8x128xbf16>
    %c0_6 = arith.constant 0 : index
    %c0_7 = arith.constant 0 : index
    %10 = vector.load %arg4[%c0_6, %c0_7] : memref<128x128xbf16, #tpu.memory_space<vmem>>, vector<128x128xbf16>
    %cst_8 = arith.constant dense<0.000000e+00> : vector<8x128xf32>
    %11 = tpu.matmul %9, %10, %cst_8 {dimension_numbers = #tpu.dot_dimension_numbers<[1], [0], [0], [1], [0, 0, 1, 1], [], []>} : vector<8x128xbf16>, vector<128x128xbf16>, vector<8x128xf32> -> vector<8x128xf32>
    %c0_9 = arith.constant 0 : index
    %c0_10 = arith.constant 0 : index
    %12 = vector.load %arg5[%c0_9, %c0_10] : memref<1x128xf32, #tpu.memory_space<vmem>>, vector<1x128xf32>
    %13 = vector.broadcast %12 : vector<1x128xf32> to vector<8x128xf32>
    %14 = arith.addf %11, %13 : vector<8x128xf32>
    %cst_11 = arith.constant 0.000000e+00 : f32
    %15 = vector.broadcast %cst_11 : f32 to vector<8x128xf32>
    %16 = arith.maximumf %14, %15 : vector<8x128xf32>
    %17 = tpu.transpose %16, [1, 0] : vector<8x128xf32> -> vector<128x8xf32>
    %c0_12 = arith.constant 0 : index
    %c0_13 = arith.constant 0 : index
    %18 = vector.load %arg6[%c0_12, %c0_13] : memref<128x1xf32, #tpu.memory_space<vmem>>, vector<128x1xf32>
    %19 = vector.broadcast %18 : vector<128x1xf32> to vector<128x8xf32>
    %20 = arith.mulf %17, %19 : vector<128x8xf32>
    %cst_14 = arith.constant dense<0.000000e+00> : vector<8xf32>
    %21 = vector.multi_reduction <add>, %20, %cst_14 [0] : vector<128x8xf32> to vector<8xf32>
    %22 = vector.shape_cast %21 : vector<8xf32> to vector<1x8xf32>
    %c0_15 = arith.constant 0 : index
    %23 = memref.load %arg7[%c0_15] : memref<1xf32, #tpu.memory_space<smem>>
    %24 = vector.broadcast %23 : f32 to vector<1x8xf32>
    %25 = arith.addf %22, %24 : vector<1x8xf32>
    %c0_16 = arith.constant 0 : index
    %c0_17 = arith.constant 0 : index
    %26 = vector.load %arg8[%c0_16, %c0_17] : memref<1x8xf32, #tpu.memory_space<vmem>>, vector<1x8xf32>
    tpu.vector_store %arg8[%c0_16, %c0_17], %25 {strides = array<i32>} : memref<1x8xf32, #tpu.memory_space<vmem>>, vector<1x8xf32>,
    return
  }
  func.func @transform_0(%arg0: i32) -> (i32, i32) {
    %c0_i32 = arith.constant 0 : i32
    %c0_i32_0 = arith.constant 0 : i32
    return %arg0, %c0_i32 : i32, i32
  }
  func.func @transform_1(%arg0: i32) -> (i32, i32) {
    %c0_i32 = arith.constant 0 : i32
    %c0_i32_0 = arith.constant 0 : i32
    %c0_i32_1 = arith.constant 0 : i32
    return %c0_i32, %c0_i32_0 : i32, i32
  }
  func.func @transform_2(%arg0: i32) -> (i32, i32) {
    %c0_i32 = arith.constant 0 : i32
    %c0_i32_0 = arith.constant 0 : i32
    %c0_i32_1 = arith.constant 0 : i32
    return %c0_i32, %c0_i32_0 : i32, i32
  }
  func.func @transform_3(%arg0: i32) -> (i32, i32) {
    %c0_i32 = arith.constant 0 : i32
    %c0_i32_0 = arith.constant 0 : i32
    %c0_i32_1 = arith.constant 0 : i32
    return %c0_i32, %c0_i32_0 : i32, i32
  }
  func.func @transform_4(%arg0: i32) -> (i32, i32) {
    %c0_i32 = arith.constant 0 : i32
    %c0_i32_0 = arith.constant 0 : i32
    %c0_i32_1 = arith.constant 0 : i32
    return %c0_i32, %c0_i32_0 : i32, i32
  }
  func.func @transform_5(%arg0: i32) -> (i32, i32) {
    %c0_i32 = arith.constant 0 : i32
    %c0_i32_0 = arith.constant 0 : i32
    %c0_i32_1 = arith.constant 0 : i32
    return %c0_i32, %c0_i32_0 : i32, i32
  }
  func.func @transform_6(%arg0: i32) -> i32 {
    %c0_i32 = arith.constant 0 : i32
    %c0_i32_0 = arith.constant 0 : i32
    return %c0_i32 : i32
  }
  func.func @transform_7(%arg0: i32) -> (i32, i32) {
    %c0_i32 = arith.constant 0 : i32
    %c0_i32_0 = arith.constant 0 : i32
    return %c0_i32, %arg0 : i32, i32
  }
}

</mosaic_0001>

<llo_original>
// kernel: tpu_custom_call.1
$region0: #{tpu_custom_call.1}
  #allocation0 [shape = 'u32[]', space=smem, size = 0x4, offset = 0x4, fixed_abs, tag = 'smem constant byte address 0x4 - core index']
  #allocation1 [shape = 'u32[72,128]{1,0:T(1,128)}', space=vmem, size = 0x9000, scoped, tag = 'internal scratch']
  #allocation2 [shape = 'f32[1]{0:T(128)S(6)}', space=smem, size = 0x200, scoped, tag = 'scoped memory for tpu_custom_call.1']
  %s0 = inlined_call_operand.vmem [shape: f32[8,32], index: 0, kind: input, shape index: {}]
  %s1 = inlined_call_operand.vmem [shape: bf16[32,128], index: 1, kind: input, shape index: {}]
  %s2 = inlined_call_operand.vmem [shape: f32[1,128], index: 2, kind: input, shape index: {}]
  %s3 = inlined_call_operand.vmem [shape: bf16[128,128], index: 3, kind: input, shape index: {}]
  %s4 = inlined_call_operand.vmem [shape: f32[1,128], index: 4, kind: input, shape index: {}]
  %s5 = inlined_call_operand.vmem [shape: f32[128,1], index: 5, kind: input, shape index: {}]
  %s6 = inlined_call_operand.<no memory space> [shape: f32[1], index: 6, kind: input, shape index: {}]
  %s7 = inlined_call_operand.hbm [shape: f32[1,8], index: 7, kind: output, shape index: {}]
  %s8 = sld [smem:[#allocation0]]
  $region38: #{tpu_custom_call.1} parent=0
    _
  %s10 = ssub.s32 1, %s8
  %s11 = scalar_select 0, %s10, %s8
  %12 = sst [smem:[#allocation2]] %s6
  $region1: #{tpu_custom_call.1} parent=0
    #allocation3 [shape = 'u8[512]{0}', space=vmem, size = 0x400, scoped, tag = 'output window, operand 0, single buffered']
    #allocation4 [shape = 's32[1]{0}', space=sflag, size = 0x4, scoped, tag = 'scoped memory for tpu_custom_call.1']
    %13 = vsyncpa [#allocation4], 0
    // Predicated region
    $region2: #{tpu_custom_call.1} parent=1 // pred_check
      _
    $region3: #{tpu_custom_call.1} parent=1 // pred_check_branch
      %15 = sbr.rel (0) target = $region5
    $region4: #{tpu_custom_call.1} parent=1 // pred_region
      _
    $region5: #{tpu_custom_call.1} parent=1 // pred_fallthru
      _
    // Predicated region
    $region6: #{tpu_custom_call.1} parent=1 // pred_check
      _
    $region7: #{tpu_custom_call.1} parent=1 // pred_check_branch
      %17 = sbr.rel (0) target = $region9
    $region8: #{tpu_custom_call.1} parent=1 // pred_region
      _
    $region9: #{tpu_custom_call.1} parent=1 // pred_fallthru
      _
    // Predicated region
    $region10: #{tpu_custom_call.1} parent=1 // pred_check
      _
    $region11: #{tpu_custom_call.1} parent=1 // pred_check_branch
      %19 = sbr.rel (0) target = $region13
    $region12: #{tpu_custom_call.1} parent=1 // pred_region
      _
    $region13: #{tpu_custom_call.1} parent=1 // pred_fallthru
      _
    // Predicated region
    $region14: #{tpu_custom_call.1} parent=1 // pred_check
      _
    $region15: #{tpu_custom_call.1} parent=1 // pred_check_branch
      %21 = sbr.rel (0) target = $region17
    $region16: #{tpu_custom_call.1} parent=1 // pred_region
      _
    $region17: #{tpu_custom_call.1} parent=1 // pred_fallthru
      _
    // Predicated region
    $region18: #{tpu_custom_call.1} parent=1 // pred_check
      _
    $region19: #{tpu_custom_call.1} parent=1 // pred_check_branch
      %23 = sbr.rel (0) target = $region21
    $region20: #{tpu_custom_call.1} parent=1 // pred_region
      _
    $region21: #{tpu_custom_call.1} parent=1 // pred_fallthru
      _
    // Predicated region
    $region22: #{tpu_custom_call.1} parent=1 // pred_check
      _
    $region23: #{tpu_custom_call.1} parent=1 // pred_check_branch
      %25 = sbr.rel (0) target = $region25
    $region24: #{tpu_custom_call.1} parent=1 // pred_region
      _
    $region25: #{tpu_custom_call.1} parent=1 // pred_fallthru
      _
    // Predicated region
    $region26: #{tpu_custom_call.1} parent=1 // pred_check
      _
    $region27: #{tpu_custom_call.1} parent=1 // pred_check_branch
      %27 = sbr.rel (0) target = $region29
    $region28: #{tpu_custom_call.1} parent=1 // pred_region
      _
    $region29: #{tpu_custom_call.1} parent=1 // pred_fallthru
      _
    %v29 = vld [vmem:[%s0] sm:$0xff]
    %v30 = vpack.c.bf16 %v29, %v29
    %v31 = vld [vmem:[%s1] sm:$0xf]
    %v32 = vld [vmem:[%s1 + $0x4] sm:$0xf]
    %v33 = vld [vmem:[%s1 + $0x8] sm:$0xf]
    %v34 = vld [vmem:[%s1 + $0xc] sm:$0xf]
    %v35 = vld [vmem:[%s2] sm:$0x1]
    %v37 = vperm.slane %v35, 0
    %v43 = vunpack.c.l.b16 %v31
    %v44 = vunpack.c.l.b16 %v32
    %v45 = vunpack.c.l.b16 %v33
    %v46 = vunpack.c.l.b16 %v34
    %v47 = vpack.c.b16 %v44, %v43
    %v48 = vpack.c.b16 %v46, %v45
    %vm51 = vcmask 261120
    %v53 = vsel %vm51, %v30, 0
    %55 = vmatpush.bf16.msra.mxu0 0
    %56 = vmatpush.bf16.msra.mxu0 0
    %57 = vmatpush.bf16.msra.mxu0 0
    %58 = vmatpush.bf16.msra.mxu0 0
    %59 = vmatpush.bf16.msra.mxu0 0
    %60 = vmatpush.bf16.msra.mxu0 0
    %61 = vmatpush.bf16.msra.mxu0 %v48
    %62 = vmatpush.bf16.msra.mxu0 %v47
    %63 = vmatmul.bf16.gmra.mxu0 %v53
    %v64 = vpop.f32.mrf.mxu0
    %v65 = vadd.f32 %v37, %v64
    %v66 = vpop.f32.mrf.mxu0
    %67 = vdwg.mxu0
    %v68 = vmax.f32 %v65, 0.0
    %v69 = vpack.c.bf16 %v68, %v68
    %v70 = vld [vmem:[%s3] sm:$0xf]
    %v71 = vld [vmem:[%s3 + $0x4] sm:$0xf]
    %v72 = vld [vmem:[%s3 + $0x8] sm:$0xf]
    %v73 = vld [vmem:[%s3 + $0xc] sm:$0xf]
    %v74 = vld [vmem:[%s3 + $0x10] sm:$0xf]
    %v75 = vld [vmem:[%s3 + $0x14] sm:$0xf]
    %v76 = vld [vmem:[%s3 + $0x18] sm:$0xf]
    %v77 = vld [vmem:[%s3 + $0x1c] sm:$0xf]
    %v78 = vld [vmem:[%s3 + $0x20] sm:$0xf]
    %v79 = vld [vmem:[%s3 + $0x24] sm:$0xf]
    %v80 = vld [vmem:[%s3 + $0x28] sm:$0xf]
    %v81 = vld [vmem:[%s3 + $0x2c] sm:$0xf]
    %v82 = vld [vmem:[%s3 + $0x30] sm:$0xf]
    %v83 = vld [vmem:[%s3 + $0x34] sm:$0xf]
    %v84 = vld [vmem:[%s3 + $0x38] sm:$0xf]
    %v85 = vld [vmem:[%s3 + $0x3c] sm:$0xf]
    %v86 = vld [vmem:[%s4] sm:$0x1]
    %v88 = vperm.slane %v86, 0
    %v106 = vunpack.c.l.b16 %v70
    %v107 = vunpack.c.l.b16 %v71
    %v108 = vunpack.c.l.b16 %v72
    %v109 = vunpack.c.l.b16 %v73
    %v110 = vunpack.c.l.b16 %v74
    %v111 = vunpack.c.l.b16 %v75
    %v112 = vunpack.c.l.b16 %v76
    %v113 = vunpack.c.l.b16 %v77
    %v114 = vunpack.c.l.b16 %v78
    %v115 = vunpack.c.l.b16 %v79
    %v116 = vunpack.c.l.b16 %v80
    %v117 = vunpack.c.l.b16 %v81
    %v118 = vunpack.c.l.b16 %v82
    %v119 = vunpack.c.l.b16 %v83
    %v120 = vunpack.c.l.b16 %v84
    %v121 = vunpack.c.l.b16 %v85
    %v122 = vpack.c.b16 %v107, %v106
    %v123 = vpack.c.b16 %v109, %v108
    %v124 = vpack.c.b16 %v111, %v110
    %v125 = vpack.c.b16 %v113, %v112
    %v126 = vpack.c.b16 %v115, %v114
    %v127 = vpack.c.b16 %v117, %v116
    %v128 = vpack.c.b16 %v119, %v118
    %v129 = vpack.c.b16 %v121, %v120
    %138 = vmatpush.bf16.msra.mxu0 %v129
    %139 = vmatpush.bf16.msra.mxu0 %v128
    %140 = vmatpush.bf16.msra.mxu0 %v127
    %141 = vmatpush.bf16.msra.mxu0 %v126
    %142 = vmatpush.bf16.msra.mxu0 %v125
    %143 = vmatpush.bf16.msra.mxu0 %v124
    %144 = vmatpush.bf16.msra.mxu0 %v123
    %145 = vmatpush.bf16.msra.mxu0 %v122
    %146 = vmatmul.bf16.gmra.mxu0 %v69
    %v147 = vpop.f32.mrf.mxu0
    %v148 = vadd.f32 %v88, %v147
    %v149 = vpop.f32.mrf.mxu0
    %150 = vdwg.mxu0
    %v151 = vmax.f32 %v148, 0.0
    %152 = vxpose.xlu0.b32.start [1/16] %v151, 128
    %153 = vxpose.xlu0.b32.cont [2/16] 0.0, 128
    %154 = vxpose.xlu0.b32.cont [3/16] 0.0, 128
    %155 = vxpose.xlu0.b32.cont [4/16] 0.0, 128
    %156 = vxpose.xlu0.b32.cont [5/16] 0.0, 128
    %157 = vxpose.xlu0.b32.cont [6/16] 0.0, 128
    %158 = vxpose.xlu0.b32.cont [7/16] 0.0, 128
    %159 = vxpose.xlu0.b32.cont [8/16] 0.0, 128
    %160 = vxpose.xlu0.b32.cont [9/16] 0.0, 128
    %161 = vxpose.xlu0.b32.cont [10/16] 0.0, 128
    %162 = vxpose.xlu0.b32.cont [11/16] 0.0, 128
    %163 = vxpose.xlu0.b32.cont [12/16] 0.0, 128
    %164 = vxpose.xlu0.b32.cont [13/16] 0.0, 128
    %165 = vxpose.xlu0.b32.cont [14/16] 0.0, 128
    %166 = vxpose.xlu0.b32.cont [15/16] 0.0, 128
    %167 = vxpose.xlu0.b32.end [16/16] 0.0, 128
    %v168 = vpop.trf.xlu0
    %v169 = vpop.trf.xlu0
    %v170 = vpop.trf.xlu0
    %v171 = vpop.trf.xlu0
    %v172 = vpop.trf.xlu0
    %v173 = vpop.trf.xlu0
    %v174 = vpop.trf.xlu0
    %v175 = vpop.trf.xlu0
    %v176 = vpop.trf.xlu0
    %v177 = vpop.trf.xlu0
    %v178 = vpop.trf.xlu0
    %v179 = vpop.trf.xlu0
    %v180 = vpop.trf.xlu0
    %v181 = vpop.trf.xlu0
    %v182 = vpop.trf.xlu0
    %v183 = vpop.trf.xlu0
    %v184 = vld [vmem:[%s5] sm:$0xff]
    %v185 = vld [vmem:[%s5 + $0x8] sm:$0xff]
    %v186 = vld [vmem:[%s5 + $0x10] sm:$0xff]
    %v187 = vld [vmem:[%s5 + $0x18] sm:$0xff]
    %v188 = vld [vmem:[%s5 + $0x20] sm:$0xff]
    %v189 = vld [vmem:[%s5 + $0x28] sm:$0xff]
    %v190 = vld [vmem:[%s5 + $0x30] sm:$0xff]
    %v191 = vld [vmem:[%s5 + $0x38] sm:$0xff]
    %v192 = vld [vmem:[%s5 + $0x40] sm:$0xff]
    %v193 = vld [vmem:[%s5 + $0x48] sm:$0xff]
    %v194 = vld [vmem:[%s5 + $0x50] sm:$0xff]
    %v195 = vld [vmem:[%s5 + $0x58] sm:$0xff]
    %v196 = vld [vmem:[%s5 + $0x60] sm:$0xff]
    %v197 = vld [vmem:[%s5 + $0x68] sm:$0xff]
    %v198 = vld [vmem:[%s5 + $0x70] sm:$0xff]
    %v199 = vld [vmem:[%s5 + $0x78] sm:$0xff]
    %201 = vset.pattern.permute.xlu0 0
    %202 = vperm.xlu0 %201, %v184
    %v203 = vpop.permute.xlu0 %202
    %206 = vset.pattern.permute.xlu0 0
    %207 = vperm.xlu0 %206, %v185
    %v208 = vpop.permute.xlu0 %207
    %211 = vset.pattern.permute.xlu0 0
    %212 = vperm.xlu0 %211, %v186
    %v213 = vpop.permute.xlu0 %212
    %216 = vset.pattern.permute.xlu0 0
    %217 = vperm.xlu0 %216, %v187
    %v218 = vpop.permute.xlu0 %217
    %221 = vset.pattern.permute.xlu0 0
    %222 = vperm.xlu0 %221, %v188
    %v223 = vpop.permute.xlu0 %222
    %226 = vset.pattern.permute.xlu0 0
    %227 = vperm.xlu0 %226, %v189
    %v228 = vpop.permute.xlu0 %227
    %231 = vset.pattern.permute.xlu0 0
    %232 = vperm.xlu0 %231, %v190
    %v233 = vpop.permute.xlu0 %232
    %236 = vset.pattern.permute.xlu0 0
    %237 = vperm.xlu0 %236, %v191
    %v238 = vpop.permute.xlu0 %237
    %241 = vset.pattern.permute.xlu0 0
    %242 = vperm.xlu0 %241, %v192
    %v243 = vpop.permute.xlu0 %242
    %246 = vset.pattern.permute.xlu0 0
    %247 = vperm.xlu0 %246, %v193
    %v248 = vpop.permute.xlu0 %247
    %251 = vset.pattern.permute.xlu0 0
    %252 = vperm.xlu0 %251, %v194
    %v253 = vpop.permute.xlu0 %252
    %256 = vset.pattern.permute.xlu0 0
    %257 = vperm.xlu0 %256, %v195
    %v258 = vpop.permute.xlu0 %257
    %261 = vset.pattern.permute.xlu0 0
    %262 = vperm.xlu0 %261, %v196
    %v263 = vpop.permute.xlu0 %262
    %266 = vset.pattern.permute.xlu0 0
    %267 = vperm.xlu0 %266, %v197
    %v268 = vpop.permute.xlu0 %267
    %271 = vset.pattern.permute.xlu0 0
    %272 = vperm.xlu0 %271, %v198
    %v273 = vpop.permute.xlu0 %272
    %276 = vset.pattern.permute.xlu0 0
    %277 = vperm.xlu0 %276, %v199
    %v278 = vpop.permute.xlu0 %277
    %v280 = vmul.f32 %v168, %v203
    %v281 = vmul.f32 %v169, %v208
    %v282 = vmul.f32 %v170, %v213
    %v283 = vmul.f32 %v171, %v218
    %v284 = vmul.f32 %v172, %v223
    %v285 = vmul.f32 %v173, %v228
    %v286 = vmul.f32 %v174, %v233
    %v287 = vmul.f32 %v175, %v238
    %v288 = vmul.f32 %v176, %v243
    %v289 = vmul.f32 %v177, %v248
    %v290 = vmul.f32 %v178, %v253
    %v291 = vmul.f32 %v179, %v258
    %v292 = vmul.f32 %v180, %v263
    %v293 = vmul.f32 %v181, %v268
    %v294 = vmul.f32 %v182, %v273
    %v295 = vmul.f32 %v183, %v278
    %vm296 = vcmask 64512
    %v297 = vsel %vm296, %v280, 0.0
    %v298 = vsel %vm296, %v281, 0.0
    %v299 = vadd.f32 %v297, %v298
    %v300 = vsel %vm296, %v282, 0.0
    %v301 = vadd.f32 %v299, %v300
    %v302 = vsel %vm296, %v283, 0.0
    %v303 = vadd.f32 %v301, %v302
    %v304 = vsel %vm296, %v284, 0.0
    %v305 = vadd.f32 %v303, %v304
    %v306 = vsel %vm296, %v285, 0.0
    %v307 = vadd.f32 %v305, %v306
    %v308 = vsel %vm296, %v286, 0.0
    %v309 = vadd.f32 %v307, %v308
    %v310 = vsel %vm296, %v287, 0.0
    %v311 = vadd.f32 %v309, %v310
    %v312 = vsel %vm296, %v288, 0.0
    %v313 = vadd.f32 %v311, %v312
    %v314 = vsel %vm296, %v289, 0.0
    %v315 = vadd.f32 %v313, %v314
    %v316 = vsel %vm296, %v290, 0.0
    %v317 = vadd.f32 %v315, %v316
    %v318 = vsel %vm296, %v291, 0.0
    %v319 = vadd.f32 %v317, %v318
    %v320 = vsel %vm296, %v292, 0.0
    %v321 = vadd.f32 %v319, %v320
    %v322 = vsel %vm296, %v293, 0.0
    %v323 = vadd.f32 %v321, %v322
    %v324 = vsel %vm296, %v294, 0.0
    %v325 = vadd.f32 %v323, %v324
    %v326 = vsel %vm296, %v295, 0.0
    %v327 = vadd.f32 %v325, %v326
    %v328 = vrot.slane %v327, 4
    %v329 = vadd.f32 %v327, %v328
    %v330 = vrot.slane %v329, 2
    %v331 = vadd.f32 %v329, %v330
    %v332 = vrot.slane %v331, 1
    %v333 = vadd.f32 %v331, %v332
    %s334 = sld [smem:[#allocation2]]
    %v335 = vstv %s334
    %v336 = vadd.f32 %v333, %v335
    %vm337 = vcmask 57344
    %338 = vst.msk [vmem:[#allocation3] sm:$0x1] %vm337, %v336
    // Predicated region
    $region30: #{tpu_custom_call.1} parent=1 // pred_check
      _
    $region31: #{tpu_custom_call.1} parent=1 // pred_check_branch
      %340 = sbr.rel (0) target = $region33
    $region32: #{tpu_custom_call.1} parent=1 // pred_region
      %342 = vsyncadd [#allocation4], 0
      %s344 = sshll.u32 [#allocation3], 4
      %s345 = int_to_ptr.vmem [resolvable:$true] %s344
      %s346 = sshll.u32 %s7, 4
      %s347 = int_to_ptr.hbm [resolvable:$true] %s346
      %349 = dma.vmem_to_hbm [thread:$0]  %s345, 16, %s347, [#allocation4]
    $region33: #{tpu_custom_call.1} parent=1 // pred_fallthru
      _
    // Predicated region
    $region34: #{tpu_custom_call.1} parent=1 // pred_check
      _
    $region35: #{tpu_custom_call.1} parent=1 // pred_check_branch
      %351 = sbr.rel (0) target = $region37
    $region36: #{tpu_custom_call.1} parent=1 // pred_region
      %353 = dma.done [#allocation4], 16
    $region37: #{tpu_custom_call.1} parent=1 // pred_fallthru
      _
    %354 = vsyncpa [#allocation4], 1

</llo_original>
